<compile_context>
chip_gen: v6e
topology: v6e:2x2x1
jax: 0.10.0
libtpu: 0.0.40
codegen_flags: <defaults>
</compile_context>

<pallas_src>
import jax
import jax.numpy as jnp
from jax import lax
from jax.experimental import pallas as pl
from jax.experimental.pallas import tpu as pltpu


def _mlp_kernel(x_ref, w1T_ref, b1_ref, w2T_ref, b2_ref, w3_ref, b3_ref, o_ref):
    # Per grid step:
    #   x   : (batch_tile, in_dim)   natural layout (contiguous HBM rows)
    #   w1T : (hidden, in_dim)       resident
    #   b1  : (hidden, 1)
    #   w2T : (hidden, hidden)       resident
    #   b2  : (hidden, 1)
    #   w3  : (hidden, out_dim)      resident (natural layout)
    #   b3  : (1, out_dim)
    #   o   : (batch_tile, out_dim)  natural layout
    x = x_ref[...]                                               # (bt, in)

    # h1 = W1ᵀ·xᵀ — expressed as a contraction over in_dim so no explicit
    # transpose of x is materialized; result keeps batch on the lane axis.
    h1 = lax.dot_general(w1T_ref[...], x,
                         dimension_numbers=(((1,), (1,)), ((), ())),
                         preferred_element_type=jnp.float32)     # (hidden, bt)
    h1 = jnp.maximum(h1 + b1_ref[...], 0.0)

    h2 = jnp.dot(w2T_ref[...], h1.astype(w2T_ref.dtype),
                 preferred_element_type=jnp.float32)             # (hidden, bt)
    h2 = jnp.maximum(h2 + b2_ref[...], 0.0)

    # y = h2ᵀ·W3 — contraction over hidden (axis 0 of both) lands the result
    # directly in (bt, out_dim), so the store is in the natural output layout
    # and no trailing XLA transpose pass over HBM is needed.
    y = lax.dot_general(h2.astype(w3_ref.dtype), w3_ref[...],
                        dimension_numbers=(((0,), (0,)), ((), ())),
                        preferred_element_type=jnp.float32)      # (bt, out)
    o_ref[...] = (y + b3_ref[...]).astype(o_ref.dtype)


def _choose_tiling(batch, target_tile):
    """Pick (B_pad, batch_tile) such that batch_tile divides B_pad.

    - Large tiles (default target 2048) amortize the ~0.35 us per-grid-step overhead.
    - Keep the grid >= 2 even steps when the batch allows, so v7x's two TensorCores
      both get balanced work.
    - Small batches collapse to one tile (grid=(1,)): cheapest on 1-TC chips and
      bounds padding waste.
    """
    MIN = 512  # multiple of every MXU width (128 / 256) and keeps 2-way splits even
    rup = lambda a, m: ((a + m - 1) // m) * m
    B_pad = rup(batch, MIN)
    if B_pad > target_tile:
        batch_tile = target_tile
        B_pad = rup(B_pad, batch_tile)
    elif B_pad >= 2 * MIN:
        B_pad = rup(B_pad, 2 * MIN)        # even 2-way split for v7x
        batch_tile = B_pad // 2
    else:
        batch_tile = B_pad                 # single small tile
    return B_pad, batch_tile


def pretrain_model_forward(x, params, *, target_tile=2048, compute_dtype=jnp.bfloat16):
    """x: (B, 2*floor_num) float32. params: dict of w1,b1,w2,b2,w3,b3.

    compute_dtype=bf16 (default) uses the bf16 MXU path on v6e/v7x and halves x DMA
    bytes; accumulation is float32 either way. Pass jnp.float32 for bit-tight results.
    """
    B, in_dim = x.shape
    hidden = params["w1"].shape[1]
    out_dim = params["w3"].shape[1]

    B_pad, batch_tile = _choose_tiling(B, target_tile)
    if B_pad != B:
        x = jnp.pad(x, ((0, B_pad - B), (0, 0)))   # padded rows are sliced off below
    x = x.astype(compute_dtype)                    # pad+cast fuse into one XLA copy

    # Layer-1/2 weights pre-transposed so the kernel's (hidden, k) @ (k, batch)
    # matmuls keep batch on the lane axis; layer-3 weight stays natural.
    w1T = params["w1"].T.astype(compute_dtype)     # (hidden, in_dim)
    w2T = params["w2"].T.astype(compute_dtype)     # (hidden, hidden)
    w3 = params["w3"].astype(compute_dtype)        # (hidden, out_dim)
    b1 = params["b1"].reshape(hidden, 1).astype(jnp.float32)
    b2 = params["b2"].reshape(hidden, 1).astype(jnp.float32)
    b3 = params["b3"].reshape(1, out_dim).astype(jnp.float32)

    grid = (B_pad // batch_tile,)
    full = lambda shape: pl.BlockSpec(shape, lambda i: (0, 0))   # resident blocks

    bytes_el = jnp.dtype(compute_dtype).itemsize
    cost = pl.CostEstimate(
        flops=2 * B_pad * (in_dim * hidden + hidden * hidden + hidden * out_dim),
        transcendentals=0,
        bytes_accessed=(B_pad * in_dim * bytes_el            # x
                        + B_pad * out_dim * 4                 # y (f32)
                        + (hidden * in_dim + hidden * hidden + hidden * out_dim) * bytes_el
                        + (2 * hidden + out_dim) * 4),        # biases
    )

    y = pl.pallas_call(
        _mlp_kernel,
        out_shape=jax.ShapeDtypeStruct((B_pad, out_dim), jnp.float32),
        grid_spec=pltpu.PrefetchScalarGridSpec(
            num_scalar_prefetch=0,
            grid=grid,
            in_specs=[
                pl.BlockSpec((batch_tile, in_dim), lambda i: (i, 0)),  # x tile, natural layout
                full((hidden, in_dim)),    # w1ᵀ
                full((hidden, 1)),         # b1
                full((hidden, hidden)),    # w2ᵀ
                full((hidden, 1)),         # b2
                full((hidden, out_dim)),   # w3
                full((1, out_dim)),        # b3
            ],
            out_specs=pl.BlockSpec((batch_tile, out_dim), lambda i: (i, 0)),
        ),
        compiler_params=pltpu.CompilerParams(
            dimension_semantics=("parallel",),   # batch tiles shard across v7x's 2 TCs
        ),
        cost_estimate=cost,
    )(x, w1T, b1, w2T, b2, w3, b3)

    if B_pad != B:
        y = y[:B]
    return y


def init_params(key, floor_num, hidden=64):
    """Deterministic synthetic init mirroring the PyTorch layer shapes."""
    in_dim = floor_num * 2
    out_dim = floor_num * 2
    k1, k2, k3, k4, k5, k6 = jax.random.split(key, 6)

    def uinit(k, shape, fan_in):
        bound = 1.0 / jnp.sqrt(jnp.float32(fan_in))
        return jax.random.uniform(k, shape, jnp.float32, -bound, bound)

    return {
        "w1": uinit(k1, (in_dim, hidden), in_dim),
        "b1": uinit(k2, (1, hidden), in_dim),
        "w2": uinit(k3, (hidden, hidden), hidden),
        "b2": uinit(k4, (1, hidden), hidden),
        "w3": uinit(k5, (hidden, out_dim), hidden),
        "b3": uinit(k6, (1, out_dim), hidden),
    }


def _reference_forward(x, p):
    h1 = jnp.maximum(x @ p["w1"] + p["b1"], 0.0)
    h2 = jnp.maximum(h1 @ p["w2"] + p["b2"], 0.0)
    return h2 @ p["w3"] + p["b3"]


if __name__ == "__main__":
    floor_num = 8          # -> in/out features = 16
    key = jax.random.PRNGKey(0)
    kx, kp = jax.random.split(key)
    params = init_params(kp, floor_num)

    # Ragged small batch: single 512-lane tile, grid=(1,).
    x_small = jax.random.normal(kx, (300, floor_num * 2), jnp.float32)
    # Larger ragged batch: exercises the 2-step "parallel" grid (1024-lane tiles).
    x_big = jnp.concatenate([x_small] * 5, axis=0)[:1300]

    ref_small = _reference_forward(x_small, params)
    ref_big = _reference_forward(x_big, params)

    # Default bf16 operand path (v6e/v7x MXU-friendly), f32 accumulation.
    y_bf16 = jax.block_until_ready(pretrain_model_forward(x_small, params))
    assert y_bf16.shape == (300, floor_num * 2)
    assert jnp.allclose(y_bf16, ref_small, atol=3e-2, rtol=5e-2), "bf16 path mismatch"

    y_big = jax.block_until_ready(pretrain_model_forward(x_big, params))
    assert y_big.shape == (1300, floor_num * 2)
    assert jnp.allclose(y_big, ref_big, atol=3e-2, rtol=5e-2), "bf16 multi-tile mismatch"

    # f32 operand path for a bit-tight check against the reference.
    y_f32 = jax.block_until_ready(
        pretrain_model_forward(x_small, params, compute_dtype=jnp.float32))
    assert jnp.allclose(y_f32, ref_small, atol=1e-4, rtol=1e-5), "f32 path mismatch"

    print("KERNEL_OK")
</pallas_src>

<mosaic_0001>
module attributes {stable_mosaic.version = 11 : i64} {
  func.func @_mlp_kernel(%arg0: i32, %arg1: memref<512x16xbf16, #tpu.memory_space<vmem>>, %arg2: memref<64x16xbf16, #tpu.memory_space<vmem>>, %arg3: memref<64x1xf32, #tpu.memory_space<vmem>>, %arg4: memref<64x64xbf16, #tpu.memory_space<vmem>>, %arg5: memref<64x1xf32, #tpu.memory_space<vmem>>, %arg6: memref<64x16xbf16, #tpu.memory_space<vmem>>, %arg7: memref<1x16xf32, #tpu.memory_space<vmem>>, %arg8: memref<512x16xf32, #tpu.memory_space<vmem>>) attributes {dimension_semantics = [#tpu.dimension_semantics<parallel>], iteration_bounds = array<i64: 1>, scalar_prefetch = 0 : i64, scratch_operands = 0 : i64, tpu.core_type = #tpu.core_type<tc>, window_params = [{transform_indices = @transform_0, window_bounds = array<i64: 512, 16>}, {pipeline_mode = #tpu.pipeline_mode<synchronous>, transform_indices = @transform_1, window_bounds = array<i64: 64, 16>}, {pipeline_mode = #tpu.pipeline_mode<synchronous>, transform_indices = @transform_2, window_bounds = array<i64: 64, 1>}, {pipeline_mode = #tpu.pipeline_mode<synchronous>, transform_indices = @transform_3, window_bounds = array<i64: 64, 64>}, {pipeline_mode = #tpu.pipeline_mode<synchronous>, transform_indices = @transform_4, window_bounds = array<i64: 64, 1>}, {pipeline_mode = #tpu.pipeline_mode<synchronous>, transform_indices = @transform_5, window_bounds = array<i64: 64, 16>}, {pipeline_mode = #tpu.pipeline_mode<synchronous>, transform_indices = @transform_6, window_bounds = array<i64: 1, 16>}, {transform_indices = @transform_7, window_bounds = array<i64: 512, 16>}]} {
    %c0 = arith.constant 0 : index
    %c0_0 = arith.constant 0 : index
    %0 = vector.load %arg1[%c0, %c0_0] : memref<512x16xbf16, #tpu.memory_space<vmem>>, vector<512x16xbf16>
    %c0_1 = arith.constant 0 : index
    %c0_2 = arith.constant 0 : index
    %1 = vector.load %arg2[%c0_1, %c0_2] : memref<64x16xbf16, #tpu.memory_space<vmem>>, vector<64x16xbf16>
    %cst = arith.constant dense<0.000000e+00> : vector<64x512xf32>
    %2 = tpu.matmul %1, %0, %cst {dimension_numbers = #tpu.dot_dimension_numbers<[1], [1], [0], [0], [0, 0, 1, 0], [], []>} : vector<64x16xbf16>, vector<512x16xbf16>, vector<64x512xf32> -> vector<64x512xf32>
    %c0_3 = arith.constant 0 : index
    %c0_4 = arith.constant 0 : index
    %3 = vector.load %arg3[%c0_3, %c0_4] : memref<64x1xf32, #tpu.memory_space<vmem>>, vector<64x1xf32>
    %4 = vector.broadcast %3 : vector<64x1xf32> to vector<64x512xf32>
    %5 = arith.addf %2, %4 : vector<64x512xf32>
    %cst_5 = arith.constant 0.000000e+00 : f32
    %6 = vector.broadcast %cst_5 : f32 to vector<64x512xf32>
    %7 = arith.maximumf %5, %6 : vector<64x512xf32>
    %c0_6 = arith.constant 0 : index
    %c0_7 = arith.constant 0 : index
    %8 = vector.load %arg4[%c0_6, %c0_7] : memref<64x64xbf16, #tpu.memory_space<vmem>>, vector<64x64xbf16>
    %9 = arith.truncf %7 : vector<64x512xf32> to vector<64x512xbf16>
    %cst_8 = arith.constant dense<0.000000e+00> : vector<64x512xf32>
    %10 = tpu.matmul %8, %9, %cst_8 {dimension_numbers = #tpu.dot_dimension_numbers<[1], [0], [0], [1], [0, 0, 1, 1], [], []>} : vector<64x64xbf16>, vector<64x512xbf16>, vector<64x512xf32> -> vector<64x512xf32>
    %c0_9 = arith.constant 0 : index
    %c0_10 = arith.constant 0 : index
    %11 = vector.load %arg5[%c0_9, %c0_10] : memref<64x1xf32, #tpu.memory_space<vmem>>, vector<64x1xf32>
    %12 = vector.broadcast %11 : vector<64x1xf32> to vector<64x512xf32>
    %13 = arith.addf %10, %12 : vector<64x512xf32>
    %cst_11 = arith.constant 0.000000e+00 : f32
    %14 = vector.broadcast %cst_11 : f32 to vector<64x512xf32>
    %15 = arith.maximumf %13, %14 : vector<64x512xf32>
    %16 = arith.truncf %15 : vector<64x512xf32> to vector<64x512xbf16>
    %c0_12 = arith.constant 0 : index
    %c0_13 = arith.constant 0 : index
    %17 = vector.load %arg6[%c0_12, %c0_13] : memref<64x16xbf16, #tpu.memory_space<vmem>>, vector<64x16xbf16>
    %cst_14 = arith.constant dense<0.000000e+00> : vector<512x16xf32>
    %18 = tpu.matmul %16, %17, %cst_14 {dimension_numbers = #tpu.dot_dimension_numbers<[0], [0], [1], [1], [0, 1, 1, 1], [], []>} : vector<64x512xbf16>, vector<64x16xbf16>, vector<512x16xf32> -> vector<512x16xf32>
    %c0_15 = arith.constant 0 : index
    %c0_16 = arith.constant 0 : index
    %19 = vector.load %arg7[%c0_15, %c0_16] : memref<1x16xf32, #tpu.memory_space<vmem>>, vector<1x16xf32>
    %20 = vector.broadcast %19 : vector<1x16xf32> to vector<512x16xf32>
    %21 = arith.addf %18, %20 : vector<512x16xf32>
    %c0_17 = arith.constant 0 : index
    %c0_18 = arith.constant 0 : index
    %22 = vector.load %arg8[%c0_17, %c0_18] : memref<512x16xf32, #tpu.memory_space<vmem>>, vector<512x16xf32>
    tpu.vector_store %arg8[%c0_17, %c0_18], %21 {strides = array<i32>} : memref<512x16xf32, #tpu.memory_space<vmem>>, vector<512x16xf32>,
    return
  }
  func.func @transform_0(%arg0: i32) -> (i32, i32) {
    %c0_i32 = arith.constant 0 : i32
    %c0_i32_0 = arith.constant 0 : i32
    return %arg0, %c0_i32 : i32, i32
  }
  func.func @transform_1(%arg0: i32) -> (i32, i32) {
    %c0_i32 = arith.constant 0 : i32
    %c0_i32_0 = arith.constant 0 : i32
    %c0_i32_1 = arith.constant 0 : i32
    return %c0_i32, %c0_i32_0 : i32, i32
  }
  func.func @transform_2(%arg0: i32) -> (i32, i32) {
    %c0_i32 = arith.constant 0 : i32
    %c0_i32_0 = arith.constant 0 : i32
    %c0_i32_1 = arith.constant 0 : i32
    return %c0_i32, %c0_i32_0 : i32, i32
  }
  func.func @transform_3(%arg0: i32) -> (i32, i32) {
    %c0_i32 = arith.constant 0 : i32
    %c0_i32_0 = arith.constant 0 : i32
    %c0_i32_1 = arith.constant 0 : i32
    return %c0_i32, %c0_i32_0 : i32, i32
  }
  func.func @transform_4(%arg0: i32) -> (i32, i32) {
    %c0_i32 = arith.constant 0 : i32
    %c0_i32_0 = arith.constant 0 : i32
    %c0_i32_1 = arith.constant 0 : i32
    return %c0_i32, %c0_i32_0 : i32, i32
  }
  func.func @transform_5(%arg0: i32) -> (i32, i32) {
    %c0_i32 = arith.constant 0 : i32
    %c0_i32_0 = arith.constant 0 : i32
    %c0_i32_1 = arith.constant 0 : i32
    return %c0_i32, %c0_i32_0 : i32, i32
  }
  func.func @transform_6(%arg0: i32) -> (i32, i32) {
    %c0_i32 = arith.constant 0 : i32
    %c0_i32_0 = arith.constant 0 : i32
    %c0_i32_1 = arith.constant 0 : i32
    return %c0_i32, %c0_i32_0 : i32, i32
  }
  func.func @transform_7(%arg0: i32) -> (i32, i32) {
    %c0_i32 = arith.constant 0 : i32
    %c0_i32_0 = arith.constant 0 : i32
    return %arg0, %c0_i32 : i32, i32
  }
}

</mosaic_0001>

<llo_original>
// kernel: tpu_custom_call.1
$region0: #{tpu_custom_call.1}
  #allocation0 [shape = 'u32[]', space=smem, size = 0x4, offset = 0x4, fixed_abs, tag = 'smem constant byte address 0x4 - core index']
  #allocation1 [shape = 'u32[144,128]{1,0:T(1,128)}', space=vmem, size = 0x12000, scoped, tag = 'internal scratch']
  %s0 = inlined_call_operand.vmem [shape: bf16[512,16], index: 0, kind: input, shape index: {}]
  %s1 = inlined_call_operand.vmem [shape: bf16[64,16], index: 1, kind: input, shape index: {}]
  %s2 = inlined_call_operand.vmem [shape: f32[64,1], index: 2, kind: input, shape index: {}]
  %s3 = inlined_call_operand.vmem [shape: bf16[64,64], index: 3, kind: input, shape index: {}]
  %s4 = inlined_call_operand.vmem [shape: f32[64,1], index: 4, kind: input, shape index: {}]
  %s5 = inlined_call_operand.vmem [shape: bf16[64,16], index: 5, kind: input, shape index: {}]
  %s6 = inlined_call_operand.vmem [shape: f32[1,16], index: 6, kind: input, shape index: {}]
  %s7 = inlined_call_operand.vmem [shape: f32[512,16], index: 7, kind: output, shape index: {}]
  %s8 = sld [smem:[#allocation0]]
  $region38: #{tpu_custom_call.1} parent=0
    _
  %s10 = ssub.s32 1, %s8
  %s11 = scalar_select 0, %s10, %s8
  // Predicated region
  $region2: #{tpu_custom_call.1} parent=0 // pred_check
    _
  $region3: #{tpu_custom_call.1} parent=0 // pred_check_branch
    %13 = sbr.rel (0) target = $region5
  $region4: #{tpu_custom_call.1} parent=0 // pred_region
    _
  $region5: #{tpu_custom_call.1} parent=0 // pred_fallthru
    _
  // Predicated region
  $region6: #{tpu_custom_call.1} parent=0 // pred_check
    _
  $region7: #{tpu_custom_call.1} parent=0 // pred_check_branch
    %15 = sbr.rel (0) target = $region9
  $region8: #{tpu_custom_call.1} parent=0 // pred_region
    _
  $region9: #{tpu_custom_call.1} parent=0 // pred_fallthru
    _
  // Predicated region
  $region10: #{tpu_custom_call.1} parent=0 // pred_check
    _
  $region11: #{tpu_custom_call.1} parent=0 // pred_check_branch
    %17 = sbr.rel (0) target = $region13
  $region12: #{tpu_custom_call.1} parent=0 // pred_region
    _
  $region13: #{tpu_custom_call.1} parent=0 // pred_fallthru
    _
  // Predicated region
  $region14: #{tpu_custom_call.1} parent=0 // pred_check
    _
  $region15: #{tpu_custom_call.1} parent=0 // pred_check_branch
    %19 = sbr.rel (0) target = $region17
  $region16: #{tpu_custom_call.1} parent=0 // pred_region
    _
  $region17: #{tpu_custom_call.1} parent=0 // pred_fallthru
    _
  // Predicated region
  $region18: #{tpu_custom_call.1} parent=0 // pred_check
    _
  $region19: #{tpu_custom_call.1} parent=0 // pred_check_branch
    %21 = sbr.rel (0) target = $region21
  $region20: #{tpu_custom_call.1} parent=0 // pred_region
    _
  $region21: #{tpu_custom_call.1} parent=0 // pred_fallthru
    _
  // Predicated region
  $region22: #{tpu_custom_call.1} parent=0 // pred_check
    _
  $region23: #{tpu_custom_call.1} parent=0 // pred_check_branch
    %23 = sbr.rel (0) target = $region25
  $region24: #{tpu_custom_call.1} parent=0 // pred_region
    _
  $region25: #{tpu_custom_call.1} parent=0 // pred_fallthru
    _
  // Predicated region
  $region26: #{tpu_custom_call.1} parent=0 // pred_check
    _
  $region27: #{tpu_custom_call.1} parent=0 // pred_check_branch
    %25 = sbr.rel (0) target = $region29
  $region28: #{tpu_custom_call.1} parent=0 // pred_region
    _
  $region29: #{tpu_custom_call.1} parent=0 // pred_fallthru
    _
  %v27 = vld [vmem:[%s0] sm:$0xf]
  %v28 = vld [vmem:[%s0 + $0x4] sm:$0xf]
  %v29 = vld [vmem:[%s0 + $0x8] sm:$0xf]
  %v30 = vld [vmem:[%s0 + $0xc] sm:$0xf]
  %v31 = vld [vmem:[%s0 + $0x10] sm:$0xf]
  %v32 = vld [vmem:[%s0 + $0x14] sm:$0xf]
  %v33 = vld [vmem:[%s0 + $0x18] sm:$0xf]
  %v34 = vld [vmem:[%s0 + $0x1c] sm:$0xf]
  %v35 = vld [vmem:[%s0 + $0x20] sm:$0xf]
  %v36 = vld [vmem:[%s0 + $0x24] sm:$0xf]
  %v37 = vld [vmem:[%s0 + $0x28] sm:$0xf]
  %v38 = vld [vmem:[%s0 + $0x2c] sm:$0xf]
  %v39 = vld [vmem:[%s0 + $0x30] sm:$0xf]
  %v40 = vld [vmem:[%s0 + $0x34] sm:$0xf]
  %v41 = vld [vmem:[%s0 + $0x38] sm:$0xf]
  %v42 = vld [vmem:[%s0 + $0x3c] sm:$0xf]
  %v43 = vld [vmem:[%s0 + $0x40] sm:$0xf]
  %v44 = vld [vmem:[%s0 + $0x44] sm:$0xf]
  %v45 = vld [vmem:[%s0 + $0x48] sm:$0xf]
  %v46 = vld [vmem:[%s0 + $0x4c] sm:$0xf]
  %v47 = vld [vmem:[%s0 + $0x50] sm:$0xf]
  %v48 = vld [vmem:[%s0 + $0x54] sm:$0xf]
  %v49 = vld [vmem:[%s0 + $0x58] sm:$0xf]
  %v50 = vld [vmem:[%s0 + $0x5c] sm:$0xf]
  %v51 = vld [vmem:[%s0 + $0x60] sm:$0xf]
  %v52 = vld [vmem:[%s0 + $0x64] sm:$0xf]
  %v53 = vld [vmem:[%s0 + $0x68] sm:$0xf]
  %v54 = vld [vmem:[%s0 + $0x6c] sm:$0xf]
  %v55 = vld [vmem:[%s0 + $0x70] sm:$0xf]
  %v56 = vld [vmem:[%s0 + $0x74] sm:$0xf]
  %v57 = vld [vmem:[%s0 + $0x78] sm:$0xf]
  %v58 = vld [vmem:[%s0 + $0x7c] sm:$0xf]
  %v59 = vld [vmem:[%s0 + $0x80] sm:$0xf]
  %v60 = vld [vmem:[%s0 + $0x84] sm:$0xf]
  %v61 = vld [vmem:[%s0 + $0x88] sm:$0xf]
  %v62 = vld [vmem:[%s0 + $0x8c] sm:$0xf]
  %v63 = vld [vmem:[%s0 + $0x90] sm:$0xf]
  %v64 = vld [vmem:[%s0 + $0x94] sm:$0xf]
  %v65 = vld [vmem:[%s0 + $0x98] sm:$0xf]
  %v66 = vld [vmem:[%s0 + $0x9c] sm:$0xf]
  %v67 = vld [vmem:[%s0 + $0xa0] sm:$0xf]
  %v68 = vld [vmem:[%s0 + $0xa4] sm:$0xf]
  %v69 = vld [vmem:[%s0 + $0xa8] sm:$0xf]
  %v70 = vld [vmem:[%s0 + $0xac] sm:$0xf]
  %v71 = vld [vmem:[%s0 + $0xb0] sm:$0xf]
  %v72 = vld [vmem:[%s0 + $0xb4] sm:$0xf]
  %v73 = vld [vmem:[%s0 + $0xb8] sm:$0xf]
  %v74 = vld [vmem:[%s0 + $0xbc] sm:$0xf]
  %v75 = vld [vmem:[%s0 + $0xc0] sm:$0xf]
  %v76 = vld [vmem:[%s0 + $0xc4] sm:$0xf]
  %v77 = vld [vmem:[%s0 + $0xc8] sm:$0xf]
  %v78 = vld [vmem:[%s0 + $0xcc] sm:$0xf]
  %v79 = vld [vmem:[%s0 + $0xd0] sm:$0xf]
  %v80 = vld [vmem:[%s0 + $0xd4] sm:$0xf]
  %v81 = vld [vmem:[%s0 + $0xd8] sm:$0xf]
  %v82 = vld [vmem:[%s0 + $0xdc] sm:$0xf]
  %v83 = vld [vmem:[%s0 + $0xe0] sm:$0xf]
  %v84 = vld [vmem:[%s0 + $0xe4] sm:$0xf]
  %v85 = vld [vmem:[%s0 + $0xe8] sm:$0xf]
  %v86 = vld [vmem:[%s0 + $0xec] sm:$0xf]
  %v87 = vld [vmem:[%s0 + $0xf0] sm:$0xf]
  %v88 = vld [vmem:[%s0 + $0xf4] sm:$0xf]
  %v89 = vld [vmem:[%s0 + $0xf8] sm:$0xf]
  %v90 = vld [vmem:[%s0 + $0xfc] sm:$0xf]
  %v91 = vld [vmem:[%s1] sm:$0xf]
  %v92 = vld [vmem:[%s1 + $0x4] sm:$0xf]
  %v93 = vld [vmem:[%s1 + $0x8] sm:$0xf]
  %v94 = vld [vmem:[%s1 + $0xc] sm:$0xf]
  %v95 = vld [vmem:[%s1 + $0x10] sm:$0xf]
  %v96 = vld [vmem:[%s1 + $0x14] sm:$0xf]
  %v97 = vld [vmem:[%s1 + $0x18] sm:$0xf]
  %v98 = vld [vmem:[%s1 + $0x1c] sm:$0xf]
  %v99 = vld [vmem:[%s2] sm:$0xff]
  %v100 = vld [vmem:[%s2 + $0x8] sm:$0xff]
  %v101 = vld [vmem:[%s2 + $0x10] sm:$0xff]
  %v102 = vld [vmem:[%s2 + $0x18] sm:$0xff]
  %v103 = vld [vmem:[%s2 + $0x20] sm:$0xff]
  %v104 = vld [vmem:[%s2 + $0x28] sm:$0xff]
  %v105 = vld [vmem:[%s2 + $0x30] sm:$0xff]
  %v106 = vld [vmem:[%s2 + $0x38] sm:$0xff]
  %108 = vset.pattern.permute.xlu0 0
  %109 = vperm.xlu0 %108, %v99
  %v110 = vpop.permute.xlu0 %109
  %113 = vset.pattern.permute.xlu0 0
  %114 = vperm.xlu0 %113, %v100
  %v115 = vpop.permute.xlu0 %114
  %118 = vset.pattern.permute.xlu0 0
  %119 = vperm.xlu0 %118, %v101
  %v120 = vpop.permute.xlu0 %119
  %123 = vset.pattern.permute.xlu0 0
  %124 = vperm.xlu0 %123, %v102
  %v125 = vpop.permute.xlu0 %124
  %128 = vset.pattern.permute.xlu0 0
  %129 = vperm.xlu0 %128, %v103
  %v130 = vpop.permute.xlu0 %129
  %133 = vset.pattern.permute.xlu0 0
  %134 = vperm.xlu0 %133, %v104
  %v135 = vpop.permute.xlu0 %134
  %138 = vset.pattern.permute.xlu0 0
  %139 = vperm.xlu0 %138, %v105
  %v140 = vpop.permute.xlu0 %139
  %143 = vset.pattern.permute.xlu0 0
  %144 = vperm.xlu0 %143, %v106
  %v145 = vpop.permute.xlu0 %144
  %v155 = vunpack.c.l.b16 %v91
  %v156 = vunpack.c.l.b16 %v92
  %v157 = vunpack.c.l.b16 %v93
  %v158 = vunpack.c.l.b16 %v94
  %v159 = vunpack.c.l.b16 %v95
  %v160 = vunpack.c.l.b16 %v96
  %v161 = vunpack.c.l.b16 %v97
  %v162 = vunpack.c.l.b16 %v98
  %v163 = vpack.c.b16 %v156, %v155
  %v164 = vpack.c.b16 %v158, %v157
  %v165 = vpack.c.b16 %v160, %v159
  %v166 = vpack.c.b16 %v162, %v161
  %v231 = vunpack.c.l.b16 %v27
  %v232 = vunpack.c.l.b16 %v28
  %v233 = vunpack.c.l.b16 %v29
  %v234 = vunpack.c.l.b16 %v30
  %v235 = vunpack.c.l.b16 %v31
  %v236 = vunpack.c.l.b16 %v32
  %v237 = vunpack.c.l.b16 %v33
  %v238 = vunpack.c.l.b16 %v34
  %v239 = vunpack.c.l.b16 %v35
  %v240 = vunpack.c.l.b16 %v36
  %v241 = vunpack.c.l.b16 %v37
  %v242 = vunpack.c.l.b16 %v38
  %v243 = vunpack.c.l.b16 %v39
  %v244 = vunpack.c.l.b16 %v40
  %v245 = vunpack.c.l.b16 %v41
  %v246 = vunpack.c.l.b16 %v42
  %v247 = vunpack.c.l.b16 %v43
  %v248 = vunpack.c.l.b16 %v44
  %v249 = vunpack.c.l.b16 %v45
  %v250 = vunpack.c.l.b16 %v46
  %v251 = vunpack.c.l.b16 %v47
  %v252 = vunpack.c.l.b16 %v48
  %v253 = vunpack.c.l.b16 %v49
  %v254 = vunpack.c.l.b16 %v50
  %v255 = vunpack.c.l.b16 %v51
  %v256 = vunpack.c.l.b16 %v52
  %v257 = vunpack.c.l.b16 %v53
  %v258 = vunpack.c.l.b16 %v54
  %v259 = vunpack.c.l.b16 %v55
  %v260 = vunpack.c.l.b16 %v56
  %v261 = vunpack.c.l.b16 %v57
  %v262 = vunpack.c.l.b16 %v58
  %v263 = vunpack.c.l.b16 %v59
  %v264 = vunpack.c.l.b16 %v60
  %v265 = vunpack.c.l.b16 %v61
  %v266 = vunpack.c.l.b16 %v62
  %v267 = vunpack.c.l.b16 %v63
  %v268 = vunpack.c.l.b16 %v64
  %v269 = vunpack.c.l.b16 %v65
  %v270 = vunpack.c.l.b16 %v66
  %v271 = vunpack.c.l.b16 %v67
  %v272 = vunpack.c.l.b16 %v68
  %v273 = vunpack.c.l.b16 %v69
  %v274 = vunpack.c.l.b16 %v70
  %v275 = vunpack.c.l.b16 %v71
  %v276 = vunpack.c.l.b16 %v72
  %v277 = vunpack.c.l.b16 %v73
  %v278 = vunpack.c.l.b16 %v74
  %v279 = vunpack.c.l.b16 %v75
  %v280 = vunpack.c.l.b16 %v76
  %v281 = vunpack.c.l.b16 %v77
  %v282 = vunpack.c.l.b16 %v78
  %v283 = vunpack.c.l.b16 %v79
  %v284 = vunpack.c.l.b16 %v80
  %v285 = vunpack.c.l.b16 %v81
  %v286 = vunpack.c.l.b16 %v82
  %v287 = vunpack.c.l.b16 %v83
  %v288 = vunpack.c.l.b16 %v84
  %v289 = vunpack.c.l.b16 %v85
  %v290 = vunpack.c.l.b16 %v86
  %v291 = vunpack.c.l.b16 %v87
  %v292 = vunpack.c.l.b16 %v88
  %v293 = vunpack.c.l.b16 %v89
  %v294 = vunpack.c.l.b16 %v90
  %v295 = vpack.c.b16 %v232, %v231
  %v296 = vpack.c.b16 %v234, %v233
  %v297 = vpack.c.b16 %v236, %v235
  %v298 = vpack.c.b16 %v238, %v237
  %v299 = vpack.c.b16 %v240, %v239
  %v300 = vpack.c.b16 %v242, %v241
  %v301 = vpack.c.b16 %v244, %v243
  %v302 = vpack.c.b16 %v246, %v245
  %v303 = vpack.c.b16 %v248, %v247
  %v304 = vpack.c.b16 %v250, %v249
  %v305 = vpack.c.b16 %v252, %v251
  %v306 = vpack.c.b16 %v254, %v253
  %v307 = vpack.c.b16 %v256, %v255
  %v308 = vpack.c.b16 %v258, %v257
  %v309 = vpack.c.b16 %v260, %v259
  %v310 = vpack.c.b16 %v262, %v261
  %v311 = vpack.c.b16 %v264, %v263
  %v312 = vpack.c.b16 %v266, %v265
  %v313 = vpack.c.b16 %v268, %v267
  %v314 = vpack.c.b16 %v270, %v269
  %v315 = vpack.c.b16 %v272, %v271
  %v316 = vpack.c.b16 %v274, %v273
  %v317 = vpack.c.b16 %v276, %v275
  %v318 = vpack.c.b16 %v278, %v277
  %v319 = vpack.c.b16 %v280, %v279
  %v320 = vpack.c.b16 %v282, %v281
  %v321 = vpack.c.b16 %v284, %v283
  %v322 = vpack.c.b16 %v286, %v285
  %v323 = vpack.c.b16 %v288, %v287
  %v324 = vpack.c.b16 %v290, %v289
  %v325 = vpack.c.b16 %v292, %v291
  %v326 = vpack.c.b16 %v294, %v293
  %vm327 = vcmask 130048
  %v329 = vsel %vm327, %v163, 0
  %v332 = vsel %vm327, %v164, 0
  %v335 = vsel %vm327, %v165, 0
  %v338 = vsel %vm327, %v166, 0
  %v341 = vsel %vm327, %v295, 0
  %v344 = vsel %vm327, %v296, 0
  %v347 = vsel %vm327, %v297, 0
  %v350 = vsel %vm327, %v298, 0
  %v353 = vsel %vm327, %v299, 0
  %v356 = vsel %vm327, %v300, 0
  %v359 = vsel %vm327, %v301, 0
  %v362 = vsel %vm327, %v302, 0
  %v365 = vsel %vm327, %v303, 0
  %v368 = vsel %vm327, %v304, 0
  %v371 = vsel %vm327, %v305, 0
  %v374 = vsel %vm327, %v306, 0
  %v377 = vsel %vm327, %v307, 0
  %v380 = vsel %vm327, %v308, 0
  %v383 = vsel %vm327, %v309, 0
  %v386 = vsel %vm327, %v310, 0
  %v389 = vsel %vm327, %v311, 0
  %v392 = vsel %vm327, %v312, 0
  %v395 = vsel %vm327, %v313, 0
  %v398 = vsel %vm327, %v314, 0
  %v401 = vsel %vm327, %v315, 0
  %v404 = vsel %vm327, %v316, 0
  %v407 = vsel %vm327, %v317, 0
  %v410 = vsel %vm327, %v318, 0
  %v413 = vsel %vm327, %v319, 0
  %v416 = vsel %vm327, %v320, 0
  %v419 = vsel %vm327, %v321, 0
  %v422 = vsel %vm327, %v322, 0
  %v425 = vsel %vm327, %v323, 0
  %v428 = vsel %vm327, %v324, 0
  %v431 = vsel %vm327, %v325, 0
  %v434 = vsel %vm327, %v326, 0
  %436 = vmatprep.subr.bf16.mxu0 0
  %437 = vmatpush1.bf16.xpose.msra.mxu0 %v362
  %438 = vmatprep.subr.bf16.mxu0 0
  %439 = vmatpush1.bf16.xpose.msra.mxu0 %v359
  %440 = vmatprep.subr.bf16.mxu0 0
  %441 = vmatpush1.bf16.xpose.msra.mxu0 %v356
  %442 = vmatprep.subr.bf16.mxu0 0
  %443 = vmatpush1.bf16.xpose.msra.mxu0 %v353
  %444 = vmatprep.subr.bf16.mxu0 0
  %445 = vmatpush1.bf16.xpose.msra.mxu0 %v350
  %446 = vmatprep.subr.bf16.mxu0 0
  %447 = vmatpush1.bf16.xpose.msra.mxu0 %v347
  %448 = vmatprep.subr.bf16.mxu0 0
  %449 = vmatpush1.bf16.xpose.msra.mxu0 %v344
  %450 = vmatprep.subr.bf16.mxu0 0
  %451 = vmatpush1.bf16.xpose.msra.mxu0 %v341
  %452 = vmatprep.subr.bf16.mxu0 0
  %453 = vmatpush2.bf16.xpose.msra.mxu0 %v386
  %454 = vmatprep.subr.bf16.mxu0 0
  %455 = vmatpush2.bf16.xpose.msra.mxu0 %v383
  %456 = vmatprep.subr.bf16.mxu0 0
  %457 = vmatpush2.bf16.xpose.msra.mxu0 %v380
  %458 = vmatprep.subr.bf16.mxu0 0
  %459 = vmatpush2.bf16.xpose.msra.mxu0 %v377
  %460 = vmatprep.subr.bf16.mxu0 0
  %461 = vmatpush2.bf16.xpose.msra.mxu0 %v374
  %462 = vmatprep.subr.bf16.mxu0 0
  %463 = vmatpush2.bf16.xpose.msra.mxu0 %v371
  %464 = vmatprep.subr.bf16.mxu0 0
  %465 = vmatpush2.bf16.xpose.msra.mxu0 %v368
  %466 = vmatprep.subr.bf16.mxu0 0
  %467 = vmatpush2.bf16.xpose.msra.mxu0 %v365
  %468 = vmatprep.mubr.bf16.mxu0 0
  %469 = vmatmul.mubr.bf16.gmra.mxu0 %v329
  %v470 = vpop.f32.mrf.mxu0
  %v471 = vadd.f32 %v110, %v470
  %v472 = vpop.f32.mrf.mxu0
  %v473 = vadd.f32 %v110, %v472
  %v474 = vpop.f32.mrf.mxu0
  %v475 = vadd.f32 %v115, %v474
  %v476 = vpop.f32.mrf.mxu0
  %v477 = vadd.f32 %v115, %v476
  %478 = vmatprep.mubr.bf16.mxu0 0
  %479 = vmatmul.mubr.bf16.gmra.mxu0 %v332
  %v480 = vpop.f32.mrf.mxu0
  %v481 = vadd.f32 %v120, %v480
  %v482 = vpop.f32.mrf.mxu0
  %v483 = vadd.f32 %v120, %v482
  %v484 = vpop.f32.mrf.mxu0
  %v485 = vadd.f32 %v125, %v484
  %v486 = vpop.f32.mrf.mxu0
  %v487 = vadd.f32 %v125, %v486
  %488 = vmatprep.mubr.bf16.mxu0 0
  %489 = vmatmul.mubr.bf16.gmra.mxu0 %v335
  %v490 = vpop.f32.mrf.mxu0
  %v491 = vadd.f32 %v130, %v490
  %v492 = vpop.f32.mrf.mxu0
  %v493 = vadd.f32 %v130, %v492
  %v494 = vpop.f32.mrf.mxu0
  %v495 = vadd.f32 %v135, %v494
  %v496 = vpop.f32.mrf.mxu0
  %v497 = vadd.f32 %v135, %v496
  %498 = vmatprep.mubr.bf16.mxu0 0
  %499 = vmatmul.mubr.bf16.gmra.mxu0 %v338
  %v500 = vpop.f32.mrf.mxu0
  %v501 = vadd.f32 %v140, %v500
  %v502 = vpop.f32.mrf.mxu0
  %v503 = vadd.f32 %v140, %v502
  %v504 = vpop.f32.mrf.mxu0
  %v505 = vadd.f32 %v145, %v504
  %v506 = vpop.f32.mrf.mxu0
  %v507 = vadd.f32 %v145, %v506
  %508 = vdwg.mxu0
  %509 = vmatprep.subr.bf16.mxu0 0
  %510 = vmatpush1.bf16.xpose.msra.mxu0 %v410
  %511 = vmatprep.subr.bf16.mxu0 0
  %512 = vmatpush1.bf16.xpose.msra.mxu0 %v407
  %513 = vmatprep.subr.bf16.mxu0 0
  %514 = vmatpush1.bf16.xpose.msra.mxu0 %v404
  %515 = vmatprep.subr.bf16.mxu0 0
  %516 = vmatpush1.bf16.xpose.msra.mxu0 %v401
  %517 = vmatprep.subr.bf16.mxu0 0
  %518 = vmatpush1.bf16.xpose.msra.mxu0 %v398
  %519 = vmatprep.subr.bf16.mxu0 0
  %520 = vmatpush1.bf16.xpose.msra.mxu0 %v395
  %521 = vmatprep.subr.bf16.mxu0 0
  %522 = vmatpush1.bf16.xpose.msra.mxu0 %v392
  %523 = vmatprep.subr.bf16.mxu0 0
  %524 = vmatpush1.bf16.xpose.msra.mxu0 %v389
  %525 = vmatprep.subr.bf16.mxu0 0
  %526 = vmatpush2.bf16.xpose.msra.mxu0 %v434
  %527 = vmatprep.subr.bf16.mxu0 0
  %528 = vmatpush2.bf16.xpose.msra.mxu0 %v431
  %529 = vmatprep.subr.bf16.mxu0 0
  %530 = vmatpush2.bf16.xpose.msra.mxu0 %v428
  %531 = vmatprep.subr.bf16.mxu0 0
  %532 = vmatpush2.bf16.xpose.msra.mxu0 %v425
  %533 = vmatprep.subr.bf16.mxu0 0
  %534 = vmatpush2.bf16.xpose.msra.mxu0 %v422
  %535 = vmatprep.subr.bf16.mxu0 0
  %536 = vmatpush2.bf16.xpose.msra.mxu0 %v419
  %537 = vmatprep.subr.bf16.mxu0 0
  %538 = vmatpush2.bf16.xpose.msra.mxu0 %v416
  %539 = vmatprep.subr.bf16.mxu0 0
  %540 = vmatpush2.bf16.xpose.msra.mxu0 %v413
  %541 = vmatprep.mubr.bf16.mxu0 0
  %542 = vmatmul.mubr.bf16.gmra.mxu0 %v329
  %v543 = vpop.f32.mrf.mxu0
  %v544 = vadd.f32 %v110, %v543
  %v545 = vpop.f32.mrf.mxu0
  %v546 = vadd.f32 %v110, %v545
  %v547 = vpop.f32.mrf.mxu0
  %v548 = vadd.f32 %v115, %v547
  %v549 = vpop.f32.mrf.mxu0
  %v550 = vadd.f32 %v115, %v549
  %551 = vmatprep.mubr.bf16.mxu0 0
  %552 = vmatmul.mubr.bf16.gmra.mxu0 %v332
  %v553 = vpop.f32.mrf.mxu0
  %v554 = vadd.f32 %v120, %v553
  %v555 = vpop.f32.mrf.mxu0
  %v556 = vadd.f32 %v120, %v555
  %v557 = vpop.f32.mrf.mxu0
  %v558 = vadd.f32 %v125, %v557
  %v559 = vpop.f32.mrf.mxu0
  %v560 = vadd.f32 %v125, %v559
  %561 = vmatprep.mubr.bf16.mxu0 0
  %562 = vmatmul.mubr.bf16.gmra.mxu0 %v335
  %v563 = vpop.f32.mrf.mxu0
  %v564 = vadd.f32 %v130, %v563
  %v565 = vpop.f32.mrf.mxu0
  %v566 = vadd.f32 %v130, %v565
  %v567 = vpop.f32.mrf.mxu0
  %v568 = vadd.f32 %v135, %v567
  %v569 = vpop.f32.mrf.mxu0
  %v570 = vadd.f32 %v135, %v569
  %571 = vmatprep.mubr.bf16.mxu0 0
  %572 = vmatmul.mubr.bf16.gmra.mxu0 %v338
  %v573 = vpop.f32.mrf.mxu0
  %v574 = vadd.f32 %v140, %v573
  %v575 = vpop.f32.mrf.mxu0
  %v576 = vadd.f32 %v140, %v575
  %v577 = vpop.f32.mrf.mxu0
  %v578 = vadd.f32 %v145, %v577
  %v579 = vpop.f32.mrf.mxu0
  %v580 = vadd.f32 %v145, %v579
  %581 = vdwg.mxu0
  %v582 = vmax.f32 %v471, 0.0
  %v583 = vmax.f32 %v473, 0.0
  %v584 = vmax.f32 %v544, 0.0
  %v585 = vmax.f32 %v546, 0.0
  %v586 = vmax.f32 %v475, 0.0
  %v587 = vmax.f32 %v477, 0.0
  %v588 = vmax.f32 %v548, 0.0
  %v589 = vmax.f32 %v550, 0.0
  %v590 = vmax.f32 %v481, 0.0
  %v591 = vmax.f32 %v483, 0.0
  %v592 = vmax.f32 %v554, 0.0
  %v593 = vmax.f32 %v556, 0.0
  %v594 = vmax.f32 %v485, 0.0
  %v595 = vmax.f32 %v487, 0.0
  %v596 = vmax.f32 %v558, 0.0
  %v597 = vmax.f32 %v560, 0.0
  %v598 = vmax.f32 %v491, 0.0
  %v599 = vmax.f32 %v493, 0.0
  %v600 = vmax.f32 %v564, 0.0
  %v601 = vmax.f32 %v566, 0.0
  %v602 = vmax.f32 %v495, 0.0
  %v603 = vmax.f32 %v497, 0.0
  %v604 = vmax.f32 %v568, 0.0
  %v605 = vmax.f32 %v570, 0.0
  %v606 = vmax.f32 %v501, 0.0
  %v607 = vmax.f32 %v503, 0.0
  %v608 = vmax.f32 %v574, 0.0
  %v609 = vmax.f32 %v576, 0.0
  %v610 = vmax.f32 %v505, 0.0
  %v611 = vmax.f32 %v507, 0.0
  %v612 = vmax.f32 %v578, 0.0
  %v613 = vmax.f32 %v580, 0.0
  %v614 = vld [vmem:[%s3] sm:$0xf]
  %v615 = vld [vmem:[%s3 + $0x4] sm:$0xf]
  %v616 = vld [vmem:[%s3 + $0x8] sm:$0xf]
  %v617 = vld [vmem:[%s3 + $0xc] sm:$0xf]
  %v618 = vld [vmem:[%s3 + $0x10] sm:$0xf]
  %v619 = vld [vmem:[%s3 + $0x14] sm:$0xf]
  %v620 = vld [vmem:[%s3 + $0x18] sm:$0xf]
  %v621 = vld [vmem:[%s3 + $0x1c] sm:$0xf]
  %v622 = vpack.c.bf16 %v586, %v582
  %v623 = vpack.c.bf16 %v587, %v583
  %v624 = vpack.c.bf16 %v588, %v584
  %v625 = vpack.c.bf16 %v589, %v585
  %v626 = vpack.c.bf16 %v594, %v590
  %v627 = vpack.c.bf16 %v595, %v591
  %v628 = vpack.c.bf16 %v596, %v592
  %v629 = vpack.c.bf16 %v597, %v593
  %v630 = vpack.c.bf16 %v602, %v598
  %v631 = vpack.c.bf16 %v603, %v599
  %v632 = vpack.c.bf16 %v604, %v600
  %v633 = vpack.c.bf16 %v605, %v601
  %v634 = vpack.c.bf16 %v610, %v606
  %v635 = vpack.c.bf16 %v611, %v607
  %v636 = vpack.c.bf16 %v612, %v608
  %v637 = vpack.c.bf16 %v613, %v609
  %v638 = vld [vmem:[%s4] sm:$0xff]
  %v639 = vld [vmem:[%s4 + $0x8] sm:$0xff]
  %v640 = vld [vmem:[%s4 + $0x10] sm:$0xff]
  %v641 = vld [vmem:[%s4 + $0x18] sm:$0xff]
  %v642 = vld [vmem:[%s4 + $0x20] sm:$0xff]
  %v643 = vld [vmem:[%s4 + $0x28] sm:$0xff]
  %v644 = vld [vmem:[%s4 + $0x30] sm:$0xff]
  %v645 = vld [vmem:[%s4 + $0x38] sm:$0xff]
  %647 = vset.pattern.permute.xlu0 0
  %648 = vperm.xlu0 %647, %v638
  %v649 = vpop.permute.xlu0 %648
  %652 = vset.pattern.permute.xlu0 0
  %653 = vperm.xlu0 %652, %v639
  %v654 = vpop.permute.xlu0 %653
  %657 = vset.pattern.permute.xlu0 0
  %658 = vperm.xlu0 %657, %v640
  %v659 = vpop.permute.xlu0 %658
  %662 = vset.pattern.permute.xlu0 0
  %663 = vperm.xlu0 %662, %v641
  %v664 = vpop.permute.xlu0 %663
  %667 = vset.pattern.permute.xlu0 0
  %668 = vperm.xlu0 %667, %v642
  %v669 = vpop.permute.xlu0 %668
  %672 = vset.pattern.permute.xlu0 0
  %673 = vperm.xlu0 %672, %v643
  %v674 = vpop.permute.xlu0 %673
  %677 = vset.pattern.permute.xlu0 0
  %678 = vperm.xlu0 %677, %v644
  %v679 = vpop.permute.xlu0 %678
  %682 = vset.pattern.permute.xlu0 0
  %683 = vperm.xlu0 %682, %v645
  %v684 = vpop.permute.xlu0 %683
  %v694 = vunpack.c.l.b16 %v614
  %v695 = vunpack.c.l.b16 %v615
  %v696 = vunpack.c.l.b16 %v616
  %v697 = vunpack.c.l.b16 %v617
  %v698 = vunpack.c.l.b16 %v618
  %v699 = vunpack.c.l.b16 %v619
  %v700 = vunpack.c.l.b16 %v620
  %v701 = vunpack.c.l.b16 %v621
  %v702 = vpack.c.b16 %v695, %v694
  %v703 = vpack.c.b16 %v697, %v696
  %v704 = vpack.c.b16 %v699, %v698
  %v705 = vpack.c.b16 %v701, %v700
  %vm706 = vcmask 523264
  %v708 = vsel %vm706, %v702, 0
  %v711 = vsel %vm706, %v703, 0
  %v714 = vsel %vm706, %v704, 0
  %v717 = vsel %vm706, %v705, 0
  %719 = vmatprep.subr.bf16.mxu0 0
  %720 = vmatpush1.bf16.msra.mxu0 0
  %721 = vmatprep.subr.bf16.mxu0 0
  %722 = vmatpush1.bf16.msra.mxu0 0
  %723 = vmatprep.subr.bf16.mxu0 0
  %724 = vmatpush1.bf16.msra.mxu0 0
  %725 = vmatprep.subr.bf16.mxu0 0
  %726 = vmatpush1.bf16.msra.mxu0 0
  %727 = vmatprep.subr.bf16.mxu0 %v635
  %728 = vmatpush1.bf16.msra.mxu0 %v634
  %729 = vmatprep.subr.bf16.mxu0 %v631
  %730 = vmatpush1.bf16.msra.mxu0 %v630
  %731 = vmatprep.subr.bf16.mxu0 %v627
  %732 = vmatpush1.bf16.msra.mxu0 %v626
  %733 = vmatprep.subr.bf16.mxu0 %v623
  %734 = vmatpush1.bf16.msra.mxu0 %v622
  %735 = vmatprep.subr.bf16.mxu0 0
  %736 = vmatpush2.bf16.msra.mxu0 0
  %737 = vmatprep.subr.bf16.mxu0 0
  %738 = vmatpush2.bf16.msra.mxu0 0
  %739 = vmatprep.subr.bf16.mxu0 0
  %740 = vmatpush2.bf16.msra.mxu0 0
  %741 = vmatprep.subr.bf16.mxu0 0
  %742 = vmatpush2.bf16.msra.mxu0 0
  %743 = vmatprep.subr.bf16.mxu0 0
  %744 = vmatpush2.bf16.msra.mxu0 0
  %745 = vmatprep.subr.bf16.mxu0 0
  %746 = vmatpush2.bf16.msra.mxu0 0
  %747 = vmatprep.subr.bf16.mxu0 0
  %748 = vmatpush2.bf16.msra.mxu0 0
  %749 = vmatprep.subr.bf16.mxu0 0
  %750 = vmatpush2.bf16.msra.mxu0 0
  %751 = vmatprep.mubr.bf16.mxu0 0
  %752 = vmatmul.mubr.bf16.gmra.mxu0 %v708
  %v753 = vpop.f32.mrf.mxu0
  %v754 = vadd.f32 %v649, %v753
  %v755 = vpop.f32.mrf.mxu0
  %v756 = vadd.f32 %v649, %v755
  %v757 = vpop.f32.mrf.mxu0
  %v758 = vadd.f32 %v654, %v757
  %v759 = vpop.f32.mrf.mxu0
  %v760 = vadd.f32 %v654, %v759
  %761 = vmatprep.mubr.bf16.mxu0 0
  %762 = vmatmul.mubr.bf16.gmra.mxu0 %v711
  %v763 = vpop.f32.mrf.mxu0
  %v764 = vadd.f32 %v659, %v763
  %v765 = vpop.f32.mrf.mxu0
  %v766 = vadd.f32 %v659, %v765
  %v767 = vpop.f32.mrf.mxu0
  %v768 = vadd.f32 %v664, %v767
  %v769 = vpop.f32.mrf.mxu0
  %v770 = vadd.f32 %v664, %v769
  %771 = vmatprep.mubr.bf16.mxu0 0
  %772 = vmatmul.mubr.bf16.gmra.mxu0 %v714
  %v773 = vpop.f32.mrf.mxu0
  %v774 = vadd.f32 %v669, %v773
  %v775 = vpop.f32.mrf.mxu0
  %v776 = vadd.f32 %v669, %v775
  %v777 = vpop.f32.mrf.mxu0
  %v778 = vadd.f32 %v674, %v777
  %v779 = vpop.f32.mrf.mxu0
  %v780 = vadd.f32 %v674, %v779
  %781 = vmatprep.mubr.bf16.mxu0 0
  %782 = vmatmul.mubr.bf16.gmra.mxu0 %v717
  %v783 = vpop.f32.mrf.mxu0
  %v784 = vadd.f32 %v679, %v783
  %v785 = vpop.f32.mrf.mxu0
  %v786 = vadd.f32 %v679, %v785
  %v787 = vpop.f32.mrf.mxu0
  %v788 = vadd.f32 %v684, %v787
  %v789 = vpop.f32.mrf.mxu0
  %v790 = vadd.f32 %v684, %v789
  %791 = vdwg.mxu0
  %792 = vmatprep.subr.bf16.mxu0 0
  %793 = vmatpush1.bf16.msra.mxu0 0
  %794 = vmatprep.subr.bf16.mxu0 0
  %795 = vmatpush1.bf16.msra.mxu0 0
  %796 = vmatprep.subr.bf16.mxu0 0
  %797 = vmatpush1.bf16.msra.mxu0 0
  %798 = vmatprep.subr.bf16.mxu0 0
  %799 = vmatpush1.bf16.msra.mxu0 0
  %800 = vmatprep.subr.bf16.mxu0 %v637
  %801 = vmatpush1.bf16.msra.mxu0 %v636
  %802 = vmatprep.subr.bf16.mxu0 %v633
  %803 = vmatpush1.bf16.msra.mxu0 %v632
  %804 = vmatprep.subr.bf16.mxu0 %v629
  %805 = vmatpush1.bf16.msra.mxu0 %v628
  %806 = vmatprep.subr.bf16.mxu0 %v625
  %807 = vmatpush1.bf16.msra.mxu0 %v624
  %808 = vmatprep.subr.bf16.mxu0 0
  %809 = vmatpush2.bf16.msra.mxu0 0
  %810 = vmatprep.subr.bf16.mxu0 0
  %811 = vmatpush2.bf16.msra.mxu0 0
  %812 = vmatprep.subr.bf16.mxu0 0
  %813 = vmatpush2.bf16.msra.mxu0 0
  %814 = vmatprep.subr.bf16.mxu0 0
  %815 = vmatpush2.bf16.msra.mxu0 0
  %816 = vmatprep.subr.bf16.mxu0 0
  %817 = vmatpush2.bf16.msra.mxu0 0
  %818 = vmatprep.subr.bf16.mxu0 0
  %819 = vmatpush2.bf16.msra.mxu0 0
  %820 = vmatprep.subr.bf16.mxu0 0
  %821 = vmatpush2.bf16.msra.mxu0 0
  %822 = vmatprep.subr.bf16.mxu0 0
  %823 = vmatpush2.bf16.msra.mxu0 0
  %824 = vmatprep.mubr.bf16.mxu0 0
  %825 = vmatmul.mubr.bf16.gmra.mxu0 %v708
  %v826 = vpop.f32.mrf.mxu0
  %v827 = vadd.f32 %v649, %v826
  %v828 = vpop.f32.mrf.mxu0
  %v829 = vadd.f32 %v649, %v828
  %v830 = vpop.f32.mrf.mxu0
  %v831 = vadd.f32 %v654, %v830
  %v832 = vpop.f32.mrf.mxu0
  %v833 = vadd.f32 %v654, %v832
  %834 = vmatprep.mubr.bf16.mxu0 0
  %835 = vmatmul.mubr.bf16.gmra.mxu0 %v711
  %v836 = vpop.f32.mrf.mxu0
  %v837 = vadd.f32 %v659, %v836
  %v838 = vpop.f32.mrf.mxu0
  %v839 = vadd.f32 %v659, %v838
  %v840 = vpop.f32.mrf.mxu0
  %v841 = vadd.f32 %v664, %v840
  %v842 = vpop.f32.mrf.mxu0
  %v843 = vadd.f32 %v664, %v842
  %844 = vmatprep.mubr.bf16.mxu0 0
  %845 = vmatmul.mubr.bf16.gmra.mxu0 %v714
  %v846 = vpop.f32.mrf.mxu0
  %v847 = vadd.f32 %v669, %v846
  %v848 = vpop.f32.mrf.mxu0
  %v849 = vadd.f32 %v669, %v848
  %v850 = vpop.f32.mrf.mxu0
  %v851 = vadd.f32 %v674, %v850
  %v852 = vpop.f32.mrf.mxu0
  %v853 = vadd.f32 %v674, %v852
  %854 = vmatprep.mubr.bf16.mxu0 0
  %855 = vmatmul.mubr.bf16.gmra.mxu0 %v717
  %v856 = vpop.f32.mrf.mxu0
  %v857 = vadd.f32 %v679, %v856
  %v858 = vpop.f32.mrf.mxu0
  %v859 = vadd.f32 %v679, %v858
  %v860 = vpop.f32.mrf.mxu0
  %v861 = vadd.f32 %v684, %v860
  %v862 = vpop.f32.mrf.mxu0
  %v863 = vadd.f32 %v684, %v862
  %864 = vdwg.mxu0
  %v865 = vmax.f32 %v754, 0.0
  %v866 = vmax.f32 %v756, 0.0
  %v867 = vmax.f32 %v827, 0.0
  %v868 = vmax.f32 %v829, 0.0
  %v869 = vmax.f32 %v758, 0.0
  %v870 = vmax.f32 %v760, 0.0
  %v871 = vmax.f32 %v831, 0.0
  %v872 = vmax.f32 %v833, 0.0
  %v873 = vmax.f32 %v764, 0.0
  %v874 = vmax.f32 %v766, 0.0
  %v875 = vmax.f32 %v837, 0.0
  %v876 = vmax.f32 %v839, 0.0
  %v877 = vmax.f32 %v768, 0.0
  %v878 = vmax.f32 %v770, 0.0
  %v879 = vmax.f32 %v841, 0.0
  %v880 = vmax.f32 %v843, 0.0
  %v881 = vmax.f32 %v774, 0.0
  %v882 = vmax.f32 %v776, 0.0
  %v883 = vmax.f32 %v847, 0.0
  %v884 = vmax.f32 %v849, 0.0
  %v885 = vmax.f32 %v778, 0.0
  %v886 = vmax.f32 %v780, 0.0
  %v887 = vmax.f32 %v851, 0.0
  %v888 = vmax.f32 %v853, 0.0
  %v889 = vmax.f32 %v784, 0.0
  %v890 = vmax.f32 %v786, 0.0
  %v891 = vmax.f32 %v857, 0.0
  %v892 = vmax.f32 %v859, 0.0
  %v893 = vmax.f32 %v788, 0.0
  %v894 = vmax.f32 %v790, 0.0
  %v895 = vmax.f32 %v861, 0.0
  %v896 = vmax.f32 %v863, 0.0
  %v897 = vpack.c.bf16 %v869, %v865
  %v898 = vpack.c.bf16 %v870, %v866
  %v899 = vpack.c.bf16 %v871, %v867
  %v900 = vpack.c.bf16 %v872, %v868
  %v901 = vpack.c.bf16 %v877, %v873
  %v902 = vpack.c.bf16 %v878, %v874
  %v903 = vpack.c.bf16 %v879, %v875
  %v904 = vpack.c.bf16 %v880, %v876
  %v905 = vpack.c.bf16 %v885, %v881
  %v906 = vpack.c.bf16 %v886, %v882
  %v907 = vpack.c.bf16 %v887, %v883
  %v908 = vpack.c.bf16 %v888, %v884
  %v909 = vpack.c.bf16 %v893, %v889
  %v910 = vpack.c.bf16 %v894, %v890
  %v911 = vpack.c.bf16 %v895, %v891
  %v912 = vpack.c.bf16 %v896, %v892
  %v913 = vld [vmem:[%s5] sm:$0xf]
  %v914 = vld [vmem:[%s5 + $0x4] sm:$0xf]
  %v915 = vld [vmem:[%s5 + $0x8] sm:$0xf]
  %v916 = vld [vmem:[%s5 + $0xc] sm:$0xf]
  %v917 = vld [vmem:[%s5 + $0x10] sm:$0xf]
  %v918 = vld [vmem:[%s5 + $0x14] sm:$0xf]
  %v919 = vld [vmem:[%s5 + $0x18] sm:$0xf]
  %v920 = vld [vmem:[%s5 + $0x1c] sm:$0xf]
  %v921 = vld [vmem:[%s6] sm:$0x1]
  %v923 = vlaneseq
  %v924 = vshrl.u32 %v923, 7
  %v925 = vsub.s32 0, %v924
  %v926 = vrot.slane %v921, %v925
  %928 = vxpose.xlu0.c.b16.start [1/8] %v897, 128
  %929 = vxpose.xlu0.c.b16.cont [2/8] %v901, 128
  %930 = vxpose.xlu0.c.b16.cont [3/8] %v905, 128
  %931 = vxpose.xlu0.c.b16.cont [4/8] %v909, 128
  %932 = vxpose.xlu0.c.b16.cont [5/8] 0, 128
  %933 = vxpose.xlu0.c.b16.cont [6/8] 0, 128
  %934 = vxpose.xlu0.c.b16.cont [7/8] 0, 128
  %935 = vxpose.xlu0.c.b16.end [8/8] 0, 128
  %v936 = vpop.trf.xlu0
  %v937 = vpop.trf.xlu0
  %v938 = vpop.trf.xlu0
  %v939 = vpop.trf.xlu0
  %v940 = vpop.trf.xlu0
  %v941 = vpop.trf.xlu0
  %v942 = vpop.trf.xlu0
  %v943 = vpop.trf.xlu0
  %944 = vxpose.xlu0.c.b16.start [1/8] %v898, 128
  %945 = vxpose.xlu0.c.b16.cont [2/8] %v902, 128
  %946 = vxpose.xlu0.c.b16.cont [3/8] %v906, 128
  %947 = vxpose.xlu0.c.b16.cont [4/8] %v910, 128
  %948 = vxpose.xlu0.c.b16.cont [5/8] 0, 128
  %949 = vxpose.xlu0.c.b16.cont [6/8] 0, 128
  %950 = vxpose.xlu0.c.b16.cont [7/8] 0, 128
  %951 = vxpose.xlu0.c.b16.end [8/8] 0, 128
  %v952 = vpop.trf.xlu0
  %v953 = vpop.trf.xlu0
  %v954 = vpop.trf.xlu0
  %v955 = vpop.trf.xlu0
  %v956 = vpop.trf.xlu0
  %v957 = vpop.trf.xlu0
  %v958 = vpop.trf.xlu0
  %v959 = vpop.trf.xlu0
  %960 = vxpose.xlu0.c.b16.start [1/8] %v899, 128
  %961 = vxpose.xlu0.c.b16.cont [2/8] %v903, 128
  %962 = vxpose.xlu0.c.b16.cont [3/8] %v907, 128
  %963 = vxpose.xlu0.c.b16.cont [4/8] %v911, 128
  %964 = vxpose.xlu0.c.b16.cont [5/8] 0, 128
  %965 = vxpose.xlu0.c.b16.cont [6/8] 0, 128
  %966 = vxpose.xlu0.c.b16.cont [7/8] 0, 128
  %967 = vxpose.xlu0.c.b16.end [8/8] 0, 128
  %v968 = vpop.trf.xlu0
  %v969 = vpop.trf.xlu0
  %v970 = vpop.trf.xlu0
  %v971 = vpop.trf.xlu0
  %v972 = vpop.trf.xlu0
  %v973 = vpop.trf.xlu0
  %v974 = vpop.trf.xlu0
  %v975 = vpop.trf.xlu0
  %976 = vxpose.xlu0.c.b16.start [1/8] %v900, 128
  %977 = vxpose.xlu0.c.b16.cont [2/8] %v904, 128
  %978 = vxpose.xlu0.c.b16.cont [3/8] %v908, 128
  %979 = vxpose.xlu0.c.b16.cont [4/8] %v912, 128
  %980 = vxpose.xlu0.c.b16.cont [5/8] 0, 128
  %981 = vxpose.xlu0.c.b16.cont [6/8] 0, 128
  %982 = vxpose.xlu0.c.b16.cont [7/8] 0, 128
  %983 = vxpose.xlu0.c.b16.end [8/8] 0, 128
  %v984 = vpop.trf.xlu0
  %v985 = vpop.trf.xlu0
  %v986 = vpop.trf.xlu0
  %v987 = vpop.trf.xlu0
  %v988 = vpop.trf.xlu0
  %v989 = vpop.trf.xlu0
  %v990 = vpop.trf.xlu0
  %v991 = vpop.trf.xlu0
  %v1000 = vunpack.c.l.b16 %v913
  %v1001 = vunpack.c.l.b16 %v914
  %v1002 = vunpack.c.l.b16 %v915
  %v1003 = vunpack.c.l.b16 %v916
  %v1004 = vunpack.c.l.b16 %v917
  %v1005 = vunpack.c.l.b16 %v918
  %v1006 = vunpack.c.l.b16 %v919
  %v1007 = vunpack.c.l.b16 %v920
  %v1008 = vpack.c.b16 %v1001, %v1000
  %v1009 = vpack.c.b16 %v1003, %v1002
  %v1010 = vpack.c.b16 %v1005, %v1004
  %v1011 = vpack.c.b16 %v1007, %v1006
  %v1017 = vsel %vm706, %v936, 0
  %v1020 = vsel %vm706, %v937, 0
  %v1023 = vsel %vm706, %v938, 0
  %v1026 = vsel %vm706, %v939, 0
  %v1029 = vsel %vm706, %v940, 0
  %v1032 = vsel %vm706, %v941, 0
  %v1035 = vsel %vm706, %v942, 0
  %v1038 = vsel %vm706, %v943, 0
  %v1041 = vsel %vm706, %v952, 0
  %v1044 = vsel %vm706, %v953, 0
  %v1047 = vsel %vm706, %v954, 0
  %v1050 = vsel %vm706, %v955, 0
  %v1053 = vsel %vm706, %v956, 0
  %v1056 = vsel %vm706, %v957, 0
  %v1059 = vsel %vm706, %v958, 0
  %v1062 = vsel %vm706, %v959, 0
  %v1065 = vsel %vm706, %v968, 0
  %v1068 = vsel %vm706, %v969, 0
  %v1071 = vsel %vm706, %v970, 0
  %v1074 = vsel %vm706, %v971, 0
  %v1077 = vsel %vm706, %v972, 0
  %v1080 = vsel %vm706, %v973, 0
  %v1083 = vsel %vm706, %v974, 0
  %v1086 = vsel %vm706, %v975, 0
  %v1089 = vsel %vm706, %v984, 0
  %v1092 = vsel %vm706, %v985, 0
  %v1095 = vsel %vm706, %v986, 0
  %v1098 = vsel %vm706, %v987, 0
  %v1101 = vsel %vm706, %v988, 0
  %v1104 = vsel %vm706, %v989, 0
  %v1107 = vsel %vm706, %v990, 0
  %v1110 = vsel %vm706, %v991, 0
  %1112 = vmatprep.subr.bf16.mxu0 0
  %1113 = vmatpush1.bf16.msra.mxu0 0
  %1114 = vmatprep.subr.bf16.mxu0 0
  %1115 = vmatpush1.bf16.msra.mxu0 0
  %1116 = vmatprep.subr.bf16.mxu0 0
  %1117 = vmatpush1.bf16.msra.mxu0 0
  %1118 = vmatprep.subr.bf16.mxu0 0
  %1119 = vmatpush1.bf16.msra.mxu0 0
  %1120 = vmatprep.subr.bf16.mxu0 0
  %1121 = vmatpush1.bf16.msra.mxu0 %v1011
  %1122 = vmatprep.subr.bf16.mxu0 0
  %1123 = vmatpush1.bf16.msra.mxu0 %v1010
  %1124 = vmatprep.subr.bf16.mxu0 0
  %1125 = vmatpush1.bf16.msra.mxu0 %v1009
  %1126 = vmatprep.subr.bf16.mxu0 0
  %1127 = vmatpush1.bf16.msra.mxu0 %v1008
  %1128 = vmatprep.subr.bf16.mxu0 0
  %1129 = vmatpush2.bf16.msra.mxu0 0
  %1130 = vmatprep.subr.bf16.mxu0 0
  %1131 = vmatpush2.bf16.msra.mxu0 0
  %1132 = vmatprep.subr.bf16.mxu0 0
  %1133 = vmatpush2.bf16.msra.mxu0 0
  %1134 = vmatprep.subr.bf16.mxu0 0
  %1135 = vmatpush2.bf16.msra.mxu0 0
  %1136 = vmatprep.subr.bf16.mxu0 0
  %1137 = vmatpush2.bf16.msra.mxu0 0
  %1138 = vmatprep.subr.bf16.mxu0 0
  %1139 = vmatpush2.bf16.msra.mxu0 0
  %1140 = vmatprep.subr.bf16.mxu0 0
  %1141 = vmatpush2.bf16.msra.mxu0 0
  %1142 = vmatprep.subr.bf16.mxu0 0
  %1143 = vmatpush2.bf16.msra.mxu0 0
  %1144 = vmatprep.mubr.bf16.mxu0 0
  %1145 = vmatmul.mubr.bf16.gmra.mxu0 %v1017
  %v1146 = vpop.f32.mrf.mxu0
  %v1147 = vadd.f32 %v926, %v1146
  %v1148 = vpop.f32.mrf.mxu0
  %v1149 = vpop.f32.mrf.mxu0
  %v1150 = vadd.f32 %v926, %v1149
  %v1151 = vpop.f32.mrf.mxu0
  %1152 = vmatprep.mubr.bf16.mxu0 0
  %1153 = vmatmul.mubr.bf16.gmra.mxu0 %v1020
  %v1154 = vpop.f32.mrf.mxu0
  %v1155 = vadd.f32 %v926, %v1154
  %v1156 = vpop.f32.mrf.mxu0
  %v1157 = vpop.f32.mrf.mxu0
  %v1158 = vadd.f32 %v926, %v1157
  %v1159 = vpop.f32.mrf.mxu0
  %1160 = vmatprep.mubr.bf16.mxu0 0
  %1161 = vmatmul.mubr.bf16.gmra.mxu0 %v1023
  %v1162 = vpop.f32.mrf.mxu0
  %v1163 = vadd.f32 %v926, %v1162
  %v1164 = vpop.f32.mrf.mxu0
  %v1165 = vpop.f32.mrf.mxu0
  %v1166 = vadd.f32 %v926, %v1165
  %v1167 = vpop.f32.mrf.mxu0
  %1168 = vmatprep.mubr.bf16.mxu0 0
  %1169 = vmatmul.mubr.bf16.gmra.mxu0 %v1026
  %v1170 = vpop.f32.mrf.mxu0
  %v1171 = vadd.f32 %v926, %v1170
  %v1172 = vpop.f32.mrf.mxu0
  %v1173 = vpop.f32.mrf.mxu0
  %v1174 = vadd.f32 %v926, %v1173
  %v1175 = vpop.f32.mrf.mxu0
  %1176 = vmatprep.mubr.bf16.mxu0 0
  %1177 = vmatmul.mubr.bf16.gmra.mxu0 %v1029
  %v1178 = vpop.f32.mrf.mxu0
  %v1179 = vadd.f32 %v926, %v1178
  %v1180 = vpop.f32.mrf.mxu0
  %v1181 = vpop.f32.mrf.mxu0
  %v1182 = vadd.f32 %v926, %v1181
  %v1183 = vpop.f32.mrf.mxu0
  %1184 = vmatprep.mubr.bf16.mxu0 0
  %1185 = vmatmul.mubr.bf16.gmra.mxu0 %v1032
  %v1186 = vpop.f32.mrf.mxu0
  %v1187 = vadd.f32 %v926, %v1186
  %v1188 = vpop.f32.mrf.mxu0
  %v1189 = vpop.f32.mrf.mxu0
  %v1190 = vadd.f32 %v926, %v1189
  %v1191 = vpop.f32.mrf.mxu0
  %1192 = vmatprep.mubr.bf16.mxu0 0
  %1193 = vmatmul.mubr.bf16.gmra.mxu0 %v1035
  %v1194 = vpop.f32.mrf.mxu0
  %v1195 = vadd.f32 %v926, %v1194
  %v1196 = vpop.f32.mrf.mxu0
  %v1197 = vpop.f32.mrf.mxu0
  %v1198 = vadd.f32 %v926, %v1197
  %v1199 = vpop.f32.mrf.mxu0
  %1200 = vmatprep.mubr.bf16.mxu0 0
  %1201 = vmatmul.mubr.bf16.gmra.mxu0 %v1038
  %v1202 = vpop.f32.mrf.mxu0
  %v1203 = vadd.f32 %v926, %v1202
  %v1204 = vpop.f32.mrf.mxu0
  %v1205 = vpop.f32.mrf.mxu0
  %v1206 = vadd.f32 %v926, %v1205
  %v1207 = vpop.f32.mrf.mxu0
  %1208 = vmatprep.mubr.bf16.mxu0 0
  %1209 = vmatmul.mubr.bf16.gmra.mxu0 %v1041
  %v1210 = vpop.f32.mrf.mxu0
  %v1211 = vadd.f32 %v926, %v1210
  %v1212 = vpop.f32.mrf.mxu0
  %v1213 = vpop.f32.mrf.mxu0
  %v1214 = vadd.f32 %v926, %v1213
  %v1215 = vpop.f32.mrf.mxu0
  %1216 = vmatprep.mubr.bf16.mxu0 0
  %1217 = vmatmul.mubr.bf16.gmra.mxu0 %v1044
  %v1218 = vpop.f32.mrf.mxu0
  %v1219 = vadd.f32 %v926, %v1218
  %v1220 = vpop.f32.mrf.mxu0
  %v1221 = vpop.f32.mrf.mxu0
  %v1222 = vadd.f32 %v926, %v1221
  %v1223 = vpop.f32.mrf.mxu0
  %1224 = vmatprep.mubr.bf16.mxu0 0
  %1225 = vmatmul.mubr.bf16.gmra.mxu0 %v1047
  %v1226 = vpop.f32.mrf.mxu0
  %v1227 = vadd.f32 %v926, %v1226
  %v1228 = vpop.f32.mrf.mxu0
  %v1229 = vpop.f32.mrf.mxu0
  %v1230 = vadd.f32 %v926, %v1229
  %v1231 = vpop.f32.mrf.mxu0
  %1232 = vmatprep.mubr.bf16.mxu0 0
  %1233 = vmatmul.mubr.bf16.gmra.mxu0 %v1050
  %v1234 = vpop.f32.mrf.mxu0
  %v1235 = vadd.f32 %v926, %v1234
  %v1236 = vpop.f32.mrf.mxu0
  %v1237 = vpop.f32.mrf.mxu0
  %v1238 = vadd.f32 %v926, %v1237
  %v1239 = vpop.f32.mrf.mxu0
  %1240 = vmatprep.mubr.bf16.mxu0 0
  %1241 = vmatmul.mubr.bf16.gmra.mxu0 %v1053
  %v1242 = vpop.f32.mrf.mxu0
  %v1243 = vadd.f32 %v926, %v1242
  %v1244 = vpop.f32.mrf.mxu0
  %v1245 = vpop.f32.mrf.mxu0
  %v1246 = vadd.f32 %v926, %v1245
  %v1247 = vpop.f32.mrf.mxu0
  %1248 = vmatprep.mubr.bf16.mxu0 0
  %1249 = vmatmul.mubr.bf16.gmra.mxu0 %v1056
  %v1250 = vpop.f32.mrf.mxu0
  %v1251 = vadd.f32 %v926, %v1250
  %v1252 = vpop.f32.mrf.mxu0
  %v1253 = vpop.f32.mrf.mxu0
  %v1254 = vadd.f32 %v926, %v1253
  %v1255 = vpop.f32.mrf.mxu0
  %1256 = vmatprep.mubr.bf16.mxu0 0
  %1257 = vmatmul.mubr.bf16.gmra.mxu0 %v1059
  %v1258 = vpop.f32.mrf.mxu0
  %v1259 = vadd.f32 %v926, %v1258
  %v1260 = vpop.f32.mrf.mxu0
  %v1261 = vpop.f32.mrf.mxu0
  %v1262 = vadd.f32 %v926, %v1261
  %v1263 = vpop.f32.mrf.mxu0
  %1264 = vmatprep.mubr.bf16.mxu0 0
  %1265 = vmatmul.mubr.bf16.gmra.mxu0 %v1062
  %v1266 = vpop.f32.mrf.mxu0
  %v1267 = vadd.f32 %v926, %v1266
  %v1268 = vpop.f32.mrf.mxu0
  %v1269 = vpop.f32.mrf.mxu0
  %v1270 = vadd.f32 %v926, %v1269
  %v1271 = vpop.f32.mrf.mxu0
  %1272 = vmatprep.mubr.bf16.mxu0 0
  %1273 = vmatmul.mubr.bf16.gmra.mxu0 %v1065
  %v1274 = vpop.f32.mrf.mxu0
  %v1275 = vadd.f32 %v926, %v1274
  %v1276 = vpop.f32.mrf.mxu0
  %v1277 = vpop.f32.mrf.mxu0
  %v1278 = vadd.f32 %v926, %v1277
  %v1279 = vpop.f32.mrf.mxu0
  %1280 = vmatprep.mubr.bf16.mxu0 0
  %1281 = vmatmul.mubr.bf16.gmra.mxu0 %v1068
  %v1282 = vpop.f32.mrf.mxu0
  %v1283 = vadd.f32 %v926, %v1282
  %v1284 = vpop.f32.mrf.mxu0
  %v1285 = vpop.f32.mrf.mxu0
  %v1286 = vadd.f32 %v926, %v1285
  %v1287 = vpop.f32.mrf.mxu0
  %1288 = vmatprep.mubr.bf16.mxu0 0
  %1289 = vmatmul.mubr.bf16.gmra.mxu0 %v1071
  %v1290 = vpop.f32.mrf.mxu0
  %v1291 = vadd.f32 %v926, %v1290
  %v1292 = vpop.f32.mrf.mxu0
  %v1293 = vpop.f32.mrf.mxu0
  %v1294 = vadd.f32 %v926, %v1293
  %v1295 = vpop.f32.mrf.mxu0
  %1296 = vmatprep.mubr.bf16.mxu0 0
  %1297 = vmatmul.mubr.bf16.gmra.mxu0 %v1074
  %v1298 = vpop.f32.mrf.mxu0
  %v1299 = vadd.f32 %v926, %v1298
  %v1300 = vpop.f32.mrf.mxu0
  %v1301 = vpop.f32.mrf.mxu0
  %v1302 = vadd.f32 %v926, %v1301
  %v1303 = vpop.f32.mrf.mxu0
  %1304 = vmatprep.mubr.bf16.mxu0 0
  %1305 = vmatmul.mubr.bf16.gmra.mxu0 %v1077
  %v1306 = vpop.f32.mrf.mxu0
  %v1307 = vadd.f32 %v926, %v1306
  %v1308 = vpop.f32.mrf.mxu0
  %v1309 = vpop.f32.mrf.mxu0
  %v1310 = vadd.f32 %v926, %v1309
  %v1311 = vpop.f32.mrf.mxu0
  %1312 = vmatprep.mubr.bf16.mxu0 0
  %1313 = vmatmul.mubr.bf16.gmra.mxu0 %v1080
  %v1314 = vpop.f32.mrf.mxu0
  %v1315 = vadd.f32 %v926, %v1314
  %v1316 = vpop.f32.mrf.mxu0
  %v1317 = vpop.f32.mrf.mxu0
  %v1318 = vadd.f32 %v926, %v1317
  %v1319 = vpop.f32.mrf.mxu0
  %1320 = vmatprep.mubr.bf16.mxu0 0
  %1321 = vmatmul.mubr.bf16.gmra.mxu0 %v1083
  %v1322 = vpop.f32.mrf.mxu0
  %v1323 = vadd.f32 %v926, %v1322
  %v1324 = vpop.f32.mrf.mxu0
  %v1325 = vpop.f32.mrf.mxu0
  %v1326 = vadd.f32 %v926, %v1325
  %v1327 = vpop.f32.mrf.mxu0
  %1328 = vmatprep.mubr.bf16.mxu0 0
  %1329 = vmatmul.mubr.bf16.gmra.mxu0 %v1086
  %v1330 = vpop.f32.mrf.mxu0
  %v1331 = vadd.f32 %v926, %v1330
  %v1332 = vpop.f32.mrf.mxu0
  %v1333 = vpop.f32.mrf.mxu0
  %v1334 = vadd.f32 %v926, %v1333
  %v1335 = vpop.f32.mrf.mxu0
  %1336 = vmatprep.mubr.bf16.mxu0 0
  %1337 = vmatmul.mubr.bf16.gmra.mxu0 %v1089
  %v1338 = vpop.f32.mrf.mxu0
  %v1339 = vadd.f32 %v926, %v1338
  %v1340 = vpop.f32.mrf.mxu0
  %v1341 = vpop.f32.mrf.mxu0
  %v1342 = vadd.f32 %v926, %v1341
  %v1343 = vpop.f32.mrf.mxu0
  %1344 = vmatprep.mubr.bf16.mxu0 0
  %1345 = vmatmul.mubr.bf16.gmra.mxu0 %v1092
  %v1346 = vpop.f32.mrf.mxu0
  %v1347 = vadd.f32 %v926, %v1346
  %v1348 = vpop.f32.mrf.mxu0
  %v1349 = vpop.f32.mrf.mxu0
  %v1350 = vadd.f32 %v926, %v1349
  %v1351 = vpop.f32.mrf.mxu0
  %1352 = vmatprep.mubr.bf16.mxu0 0
  %1353 = vmatmul.mubr.bf16.gmra.mxu0 %v1095
  %v1354 = vpop.f32.mrf.mxu0
  %v1355 = vadd.f32 %v926, %v1354
  %v1356 = vpop.f32.mrf.mxu0
  %v1357 = vpop.f32.mrf.mxu0
  %v1358 = vadd.f32 %v926, %v1357
  %v1359 = vpop.f32.mrf.mxu0
  %1360 = vmatprep.mubr.bf16.mxu0 0
  %1361 = vmatmul.mubr.bf16.gmra.mxu0 %v1098
  %v1362 = vpop.f32.mrf.mxu0
  %v1363 = vadd.f32 %v926, %v1362
  %v1364 = vpop.f32.mrf.mxu0
  %v1365 = vpop.f32.mrf.mxu0
  %v1366 = vadd.f32 %v926, %v1365
  %v1367 = vpop.f32.mrf.mxu0
  %1368 = vmatprep.mubr.bf16.mxu0 0
  %1369 = vmatmul.mubr.bf16.gmra.mxu0 %v1101
  %v1370 = vpop.f32.mrf.mxu0
  %v1371 = vadd.f32 %v926, %v1370
  %v1372 = vpop.f32.mrf.mxu0
  %v1373 = vpop.f32.mrf.mxu0
  %v1374 = vadd.f32 %v926, %v1373
  %v1375 = vpop.f32.mrf.mxu0
  %1376 = vmatprep.mubr.bf16.mxu0 0
  %1377 = vmatmul.mubr.bf16.gmra.mxu0 %v1104
  %v1378 = vpop.f32.mrf.mxu0
  %v1379 = vadd.f32 %v926, %v1378
  %v1380 = vpop.f32.mrf.mxu0
  %v1381 = vpop.f32.mrf.mxu0
  %v1382 = vadd.f32 %v926, %v1381
  %v1383 = vpop.f32.mrf.mxu0
  %1384 = vmatprep.mubr.bf16.mxu0 0
  %1385 = vmatmul.mubr.bf16.gmra.mxu0 %v1107
  %v1386 = vpop.f32.mrf.mxu0
  %v1387 = vadd.f32 %v926, %v1386
  %v1388 = vpop.f32.mrf.mxu0
  %v1389 = vpop.f32.mrf.mxu0
  %v1390 = vadd.f32 %v926, %v1389
  %v1391 = vpop.f32.mrf.mxu0
  %1392 = vmatprep.mubr.bf16.mxu0 0
  %1393 = vmatmul.mubr.bf16.gmra.mxu0 %v1110
  %v1394 = vpop.f32.mrf.mxu0
  %v1395 = vadd.f32 %v926, %v1394
  %v1396 = vpop.f32.mrf.mxu0
  %v1397 = vpop.f32.mrf.mxu0
  %v1398 = vadd.f32 %v926, %v1397
  %v1399 = vpop.f32.mrf.mxu0
  %1400 = vdwg.mxu0
  %1401 = vst.msk [vmem:[%s7] sm:$0xff] %vm327, %v1147
  %1402 = vst.msk [vmem:[%s7 + $0x8] sm:$0xff] %vm327, %v1150
  %1403 = vst.msk [vmem:[%s7 + $0x10] sm:$0xff] %vm327, %v1155
  %1404 = vst.msk [vmem:[%s7 + $0x18] sm:$0xff] %vm327, %v1158
  %1405 = vst.msk [vmem:[%s7 + $0x20] sm:$0xff] %vm327, %v1163
  %1406 = vst.msk [vmem:[%s7 + $0x28] sm:$0xff] %vm327, %v1166
  %1407 = vst.msk [vmem:[%s7 + $0x30] sm:$0xff] %vm327, %v1171
  %1408 = vst.msk [vmem:[%s7 + $0x38] sm:$0xff] %vm327, %v1174
  %1409 = vst.msk [vmem:[%s7 + $0x40] sm:$0xff] %vm327, %v1179
  %1410 = vst.msk [vmem:[%s7 + $0x48] sm:$0xff] %vm327, %v1182
  %1411 = vst.msk [vmem:[%s7 + $0x50] sm:$0xff] %vm327, %v1187
  %1412 = vst.msk [vmem:[%s7 + $0x58] sm:$0xff] %vm327, %v1190
  %1413 = vst.msk [vmem:[%s7 + $0x60] sm:$0xff] %vm327, %v1195
  %1414 = vst.msk [vmem:[%s7 + $0x68] sm:$0xff] %vm327, %v1198
  %1415 = vst.msk [vmem:[%s7 + $0x70] sm:$0xff] %vm327, %v1203
  %1416 = vst.msk [vmem:[%s7 + $0x78] sm:$0xff] %vm327, %v1206
  %1417 = vst.msk [vmem:[%s7 + $0x80] sm:$0xff] %vm327, %v1211
  %1418 = vst.msk [vmem:[%s7 + $0x88] sm:$0xff] %vm327, %v1214
  %1419 = vst.msk [vmem:[%s7 + $0x90] sm:$0xff] %vm327, %v1219
  %1420 = vst.msk [vmem:[%s7 + $0x98] sm:$0xff] %vm327, %v1222
  %1421 = vst.msk [vmem:[%s7 + $0xa0] sm:$0xff] %vm327, %v1227
  %1422 = vst.msk [vmem:[%s7 + $0xa8] sm:$0xff] %vm327, %v1230
  %1423 = vst.msk [vmem:[%s7 + $0xb0] sm:$0xff] %vm327, %v1235
  %1424 = vst.msk [vmem:[%s7 + $0xb8] sm:$0xff] %vm327, %v1238
  %1425 = vst.msk [vmem:[%s7 + $0xc0] sm:$0xff] %vm327, %v1243
  %1426 = vst.msk [vmem:[%s7 + $0xc8] sm:$0xff] %vm327, %v1246
  %1427 = vst.msk [vmem:[%s7 + $0xd0] sm:$0xff] %vm327, %v1251
  %1428 = vst.msk [vmem:[%s7 + $0xd8] sm:$0xff] %vm327, %v1254
  %1429 = vst.msk [vmem:[%s7 + $0xe0] sm:$0xff] %vm327, %v1259
  %1430 = vst.msk [vmem:[%s7 + $0xe8] sm:$0xff] %vm327, %v1262
  %1431 = vst.msk [vmem:[%s7 + $0xf0] sm:$0xff] %vm327, %v1267
  %1432 = vst.msk [vmem:[%s7 + $0xf8] sm:$0xff] %vm327, %v1270
  %1433 = vst.msk [vmem:[%s7 + $0x100] sm:$0xff] %vm327, %v1275
  %1434 = vst.msk [vmem:[%s7 + $0x108] sm:$0xff] %vm327, %v1278
  %1435 = vst.msk [vmem:[%s7 + $0x110] sm:$0xff] %vm327, %v1283
  %1436 = vst.msk [vmem:[%s7 + $0x118] sm:$0xff] %vm327, %v1286
  %1437 = vst.msk [vmem:[%s7 + $0x120] sm:$0xff] %vm327, %v1291
  %1438 = vst.msk [vmem:[%s7 + $0x128] sm:$0xff] %vm327, %v1294
  %1439 = vst.msk [vmem:[%s7 + $0x130] sm:$0xff] %vm327, %v1299
  %1440 = vst.msk [vmem:[%s7 + $0x138] sm:$0xff] %vm327, %v1302
  %1441 = vst.msk [vmem:[%s7 + $0x140] sm:$0xff] %vm327, %v1307
  %1442 = vst.msk [vmem:[%s7 + $0x148] sm:$0xff] %vm327, %v1310
  %1443 = vst.msk [vmem:[%s7 + $0x150] sm:$0xff] %vm327, %v1315
  %1444 = vst.msk [vmem:[%s7 + $0x158] sm:$0xff] %vm327, %v1318
  %1445 = vst.msk [vmem:[%s7 + $0x160] sm:$0xff] %vm327, %v1323
  %1446 = vst.msk [vmem:[%s7 + $0x168] sm:$0xff] %vm327, %v1326
  %1447 = vst.msk [vmem:[%s7 + $0x170] sm:$0xff] %vm327, %v1331
  %1448 = vst.msk [vmem:[%s7 + $0x178] sm:$0xff] %vm327, %v1334
  %1449 = vst.msk [vmem:[%s7 + $0x180] sm:$0xff] %vm327, %v1339
  %1450 = vst.msk [vmem:[%s7 + $0x188] sm:$0xff] %vm327, %v1342
  %1451 = vst.msk [vmem:[%s7 + $0x190] sm:$0xff] %vm327, %v1347
  %1452 = vst.msk [vmem:[%s7 + $0x198] sm:$0xff] %vm327, %v1350
  %1453 = vst.msk [vmem:[%s7 + $0x1a0] sm:$0xff] %vm327, %v1355
  %1454 = vst.msk [vmem:[%s7 + $0x1a8] sm:$0xff] %vm327, %v1358
  %1455 = vst.msk [vmem:[%s7 + $0x1b0] sm:$0xff] %vm327, %v1363
  %1456 = vst.msk [vmem:[%s7 + $0x1b8] sm:$0xff] %vm327, %v1366
  %1457 = vst.msk [vmem:[%s7 + $0x1c0] sm:$0xff] %vm327, %v1371
  %1458 = vst.msk [vmem:[%s7 + $0x1c8] sm:$0xff] %vm327, %v1374
  %1459 = vst.msk [vmem:[%s7 + $0x1d0] sm:$0xff] %vm327, %v1379
  %1460 = vst.msk [vmem:[%s7 + $0x1d8] sm:$0xff] %vm327, %v1382
  %1461 = vst.msk [vmem:[%s7 + $0x1e0] sm:$0xff] %vm327, %v1387
  %1462 = vst.msk [vmem:[%s7 + $0x1e8] sm:$0xff] %vm327, %v1390
  %1463 = vst.msk [vmem:[%s7 + $0x1f0] sm:$0xff] %vm327, %v1395
  %1464 = vst.msk [vmem:[%s7 + $0x1f8] sm:$0xff] %vm327, %v1398
  // Predicated region
  $region30: #{tpu_custom_call.1} parent=0 // pred_check
    _
  $region31: #{tpu_custom_call.1} parent=0 // pred_check_branch
    %1466 = sbr.rel (0) target = $region33
  $region32: #{tpu_custom_call.1} parent=0 // pred_region
    _
  $region33: #{tpu_custom_call.1} parent=0 // pred_fallthru
    _
  // Predicated region
  $region34: #{tpu_custom_call.1} parent=0 // pred_check
    _
  $region35: #{tpu_custom_call.1} parent=0 // pred_check_branch
    %1468 = sbr.rel (0) target = $region37
  $region36: #{tpu_custom_call.1} parent=0 // pred_region
    _
  $region37: #{tpu_custom_call.1} parent=0 // pred_fallthru
    _

</llo_original>
